<compile_context>
chip_gen: v5e
topology: v5e:2x2
jax: 0.10.0
libtpu: 0.0.40
codegen_flags: <defaults>
</compile_context>

<pallas_src>
import functools
import math

import jax
import jax.numpy as jnp
from jax.experimental import pallas as pl
from jax.experimental.pallas import tpu as pltpu

_HALF_PI = math.pi / 2.0


# --------------------------------- kernels -----------------------------------
def _pe_add_direct_kernel(x_ref, o_ref, *, tile_rows, d_model):
    """(S, D) layout: grid step i covers rows [i*tile_rows, i*tile_rows+tile_rows)."""
    rows, cols = x_ref.shape
    row0 = pl.program_id(0) * tile_rows
    neg = -math.log(10000.0) / d_model
    # Per-column frequency/phase on a single-sublane slab (D exps per step, not
    # rows*D); broadcast along sublanes by the multiply/add below.
    col = jax.lax.broadcasted_iota(jnp.int32, (1, cols), 1)
    odd = (col & 1).astype(jnp.float32)
    inv_freq = jnp.exp((col - (col & 1)).astype(jnp.float32) * neg)      # (1, cols)
    phase = odd * _HALF_PI                                               # (1, cols)
    pos = (jax.lax.broadcasted_iota(jnp.int32, (rows, cols), 0) + row0
           ).astype(jnp.float32)                                         # (rows, cols)
    pe = jnp.sin(pos * inv_freq + phase)                                 # 1 sin / elem
    o_ref[...] = (x_ref[...].astype(jnp.float32) + pe).astype(o_ref.dtype)


def _pe_add_flat_kernel(x_ref, o_ref, *, tile_rows, d_model):
    """(S*D/128, 128) lane-dense view for small power-of-two D (< 128)."""
    rows, cols = x_ref.shape                                 # cols == 128
    row0 = pl.program_id(0) * tile_rows
    per_row = 128 // d_model                                 # original rows per slab row
    neg = -math.log(10000.0) / d_model
    lane = jax.lax.broadcasted_iota(jnp.int32, (1, cols), 1)
    d = lane & (d_model - 1)                                 # original column index
    odd = (d & 1).astype(jnp.float32)
    inv_freq = jnp.exp((d - (d & 1)).astype(jnp.float32) * neg)          # (1, cols)
    phase = odd * _HALF_PI
    # (lane - d) is a multiple of d_model (power of two) -> exact float divide.
    s_in_row = (lane - d).astype(jnp.float32) * (1.0 / d_model)          # (1, cols)
    flat_row = jax.lax.broadcasted_iota(jnp.int32, (rows, cols), 0) + row0
    pos = flat_row.astype(jnp.float32) * float(per_row) + s_in_row       # original row
    pe = jnp.sin(pos * inv_freq + phase)
    o_ref[...] = (x_ref[...].astype(jnp.float32) + pe).astype(o_ref.dtype)


def _pe_table_add_kernel(x_ref, pe_ref, o_ref):
    """Fallback: elementwise add of a BlockSpec-windowed pe table."""
    o_ref[...] = x_ref[...] + pe_ref[...]


# ------------------------------ chip-aware tiling -----------------------------
@functools.lru_cache(maxsize=1)
def _chip_config():
    """Returns (tile_budget_bytes, vmem_limit_bytes_or_None, num_tensorcores)."""
    tile_budget = 2 * 1024 * 1024       # safe default (fits v5e's 16 MiB scoped default)
    vmem_limit = None
    num_cores = 1
    try:
        info = pltpu.get_tpu_info()
        vmem_cap = int(getattr(info, "vmem_capacity_bytes", 0) or 0)
        for name in ("num_cores", "tensor_cores_per_chip", "cores_per_chip",
                     "num_tensorcores"):
            val = getattr(info, name, None)
            if val:
                num_cores = int(val)
                break
        if vmem_cap > 0:
            # 4 MiB per-stream tiles: 2 streams x 2 pipeline buffers = 16 MiB of
            # block buffers.  Raise the scoped VMEM limit explicitly (required
            # on v5e, helpful headroom on v6e), but never above half of the
            # physical VMEM (v7x: 32 MiB of 64, v5e/v6e: 48 MiB of 128).
            tile_budget = 4 * 1024 * 1024
            vmem_limit = min(48 * 1024 * 1024, vmem_cap // 2)
    except Exception:
        pass                            # interpret mode / unknown chip: safe defaults
    return tile_budget, vmem_limit, num_cores


def _sublane_multiple(dtype) -> int:
    return max(8, 32 // jnp.dtype(dtype).itemsize)


def _pick_tile_rows(n_rows, row_bytes, sub, budget, num_cores):
    """Row tile for a pl.cdiv grid: multiple of the sublane quantum `sub` (or the
    whole array).  A partial last block is fine: boundary writes are masked."""
    if n_rows <= sub or n_rows * row_bytes <= budget:
        tile = n_rows                       # single block: block dims == array dims
    else:
        tile = max(sub, min(n_rows, budget // row_bytes) // sub * sub)
    # Only split a one-block problem when a second TensorCore exists AND the
    # array is big enough that one extra ~0.35us grid step is cheap
    # (review: never force the split on single-TC v5e/v6e; skip tiny arrays).
    if (num_cores >= 2 and tile == n_rows and n_rows >= 2 * sub
            and n_rows * row_bytes >= 512 * 1024):
        half = -(-n_rows // 2)
        tile = -(-half // sub) * sub
    return tile


# ------------------------------ forward wrappers ------------------------------
def _forward_generated(x, *, tile_budget_override=None):
    """Fast path: pe generated in-kernel -> only 2 HBM streams (read x, write out)."""
    S, D = x.shape
    dtype = x.dtype
    itemsize = jnp.dtype(dtype).itemsize
    sub = _sublane_multiple(dtype)
    tile_budget, vmem_limit, num_cores = _chip_config()
    if tile_budget_override is not None:
        tile_budget = int(tile_budget_override)

    flat = (2 <= D < 128 and (D & (D - 1)) == 0 and (S * D) % 128 == 0)
    if flat:
        R, C = (S * D) // 128, 128
        x2 = x.reshape(R, C)            # row-major order preserved -> layout bitcast
        kern = _pe_add_flat_kernel
    else:
        R, C = S, D
        x2 = x
        kern = _pe_add_direct_kernel
        # TODO(synk): ragged D (< or not multiple of 128, not a small pow2) still
        # emits masked stores; padding D to 128 would fix this at extra x traffic.

    tile = _pick_tile_rows(R, C * itemsize, sub, tile_budget, num_cores)
    grid = (pl.cdiv(R, tile),)

    cparams = dict(dimension_semantics=("parallel",))
    if vmem_limit is not None:
        cparams["vmem_limit_bytes"] = int(vmem_limit)

    out2 = pl.pallas_call(
        functools.partial(kern, tile_rows=tile, d_model=D),
        out_shape=jax.ShapeDtypeStruct((R, C), dtype),
        grid_spec=pl.GridSpec(
            grid=grid,
            in_specs=[pl.BlockSpec((tile, C), lambda i: (i, 0))],
            out_specs=pl.BlockSpec((tile, C), lambda i: (i, 0)),
        ),
        compiler_params=pltpu.CompilerParams(**cparams),
        cost_estimate=pl.CostEstimate(
            flops=3 * R * C,                    # angle mul+add, x+pe add
            transcendentals=R * C,              # one sin/elem (exp is per-column)
            bytes_accessed=2 * R * C * itemsize,  # read x, write out; no pe stream
        ),
    )(x2)
    return out2.reshape(S, D) if flat else out2


@functools.lru_cache(maxsize=4)
def _cached_pe_table(d_model, max_len, dtype_name):
    return make_positional_encoding(d_model, max_len, jnp.dtype(dtype_name))


def _forward_table(x, max_len):
    """Fallback path (only if in-kernel sin is unavailable): BlockSpec-windowed
    table add.  The full pe buffer is passed; only rows < S are ever DMA'd."""
    S, D = x.shape
    dtype = x.dtype
    itemsize = jnp.dtype(dtype).itemsize
    sub = _sublane_multiple(dtype)
    tile_budget, vmem_limit, num_cores = _chip_config()
    pe = _cached_pe_table(D, max(max_len, S), jnp.dtype(dtype).name)
    tile = _pick_tile_rows(S, D * itemsize, sub, tile_budget, num_cores)
    if tile == S and S % sub != 0:
        pe = jax.lax.slice(pe, (0, 0), (S, D))   # rare ragged-S path: block == array
    grid = (pl.cdiv(S, tile),)
    cparams = dict(dimension_semantics=("parallel",))
    if vmem_limit is not None:
        cparams["vmem_limit_bytes"] = int(vmem_limit)
    return pl.pallas_call(
        _pe_table_add_kernel,
        out_shape=jax.ShapeDtypeStruct((S, D), dtype),
        grid_spec=pl.GridSpec(
            grid=grid,
            in_specs=[pl.BlockSpec((tile, D), lambda i: (i, 0)),
                      pl.BlockSpec((tile, D), lambda i: (i, 0))],
            out_specs=pl.BlockSpec((tile, D), lambda i: (i, 0)),
        ),
        compiler_params=pltpu.CompilerParams(**cparams),
        cost_estimate=pl.CostEstimate(flops=S * D, transcendentals=0,
                                      bytes_accessed=3 * S * D * itemsize),
    )(x, pe)


@functools.lru_cache(maxsize=1)
def _generated_pe_ok():
    """One-time probe: can Mosaic lower the in-kernel exp/sin and does it match
    the reference table?  If not, use the table-add fallback."""
    try:
        s, d = 8, 128
        out = jax.block_until_ready(_forward_generated(jnp.zeros((s, d), jnp.float32)))
        ref = make_positional_encoding(d, s)
        return bool(jnp.allclose(out, ref, atol=1e-3, rtol=1e-3))
    except Exception:
        return False


def positional_encoding_forward(x, max_len: int = 5000, *, tile_budget_override=None):
    """Eval-mode PositionalEncoding.forward: out = x + pe[:S] (dropout = identity)."""
    if x.ndim != 2:
        raise ValueError("expected x of shape (seq_len, d_model)")
    if x.shape[0] > max_len:
        raise ValueError(f"seq_len {x.shape[0]} exceeds max_len {max_len}")
    if _generated_pe_ok():
        return _forward_generated(x, tile_budget_override=tile_budget_override)
    return _forward_table(x, max_len)


# ---------------------- reference buffer (torch __init__ math) ----------------
def make_positional_encoding(d_model: int, max_len: int = 5000,
                             dtype=jnp.float32) -> jnp.ndarray:
    position = jnp.arange(max_len, dtype=jnp.float32)[:, None]
    div_term = jnp.exp(jnp.arange(0, d_model, 2, dtype=jnp.float32)
                       * (-math.log(10000.0) / d_model))
    pe = jnp.zeros((max_len, d_model), dtype=jnp.float32)
    pe = pe.at[:, 0::2].set(jnp.sin(position * div_term))
    pe = pe.at[:, 1::2].set(jnp.cos(position * div_term))
    return pe.astype(dtype)


# ------------------------------------ main ------------------------------------
if __name__ == "__main__":
    k1, k2, k3 = jax.random.split(jax.random.PRNGKey(0), 3)

    # Case 1: module-sized shapes (seq=8, d_model=32) -> lane-dense flattened
    # path ((8,32) viewed as (2,128), single block).
    d_model, seq_len = 32, 8
    x1 = jax.random.normal(k1, (seq_len, d_model), dtype=jnp.float32)
    out1 = jax.block_until_ready(positional_encoding_forward(x1))
    ref1 = x1 + make_positional_encoding(d_model, max_len=seq_len)
    assert out1.shape == (seq_len, d_model) and out1.dtype == x1.dtype
    assert jnp.allclose(out1, ref1, atol=5e-4, rtol=5e-4)

    # Case 2: d_model multiple of 128 -> direct full-lane path.
    d_model2, seq_len2 = 128, 256
    x2 = jax.random.normal(k2, (seq_len2, d_model2), dtype=jnp.float32)
    out2 = jax.block_until_ready(positional_encoding_forward(x2))
    ref2 = x2 + make_positional_encoding(d_model2, max_len=seq_len2)
    assert jnp.allclose(out2, ref2, atol=5e-4, rtol=5e-4)

    # Case 3: force a multi-step cdiv grid with a partial last block (tiny tile
    # budget) to exercise program_id-derived row offsets + boundary masking.
    d_model3, seq_len3 = 256, 200
    x3 = jax.random.normal(k3, (seq_len3, d_model3), dtype=jnp.float32)
    out3 = jax.block_until_ready(
        positional_encoding_forward(x3, tile_budget_override=64 * 1024))
    ref3 = x3 + make_positional_encoding(d_model3, max_len=seq_len3)
    assert jnp.allclose(out3, ref3, atol=5e-4, rtol=5e-4)

    print("KERNEL_OK")
</pallas_src>

<mosaic_0001>
module attributes {stable_mosaic.version = 11 : i64} {
  func.func @_pe_add_direct_kernel(%arg0: i32, %arg1: memref<8x128xf32, #tpu.memory_space<vmem>>, %arg2: memref<8x128xf32, #tpu.memory_space<vmem>>) attributes {dimension_semantics = [#tpu.dimension_semantics<parallel>], iteration_bounds = array<i64: 1>, scalar_prefetch = 0 : i64, scratch_operands = 0 : i64, tpu.core_type = #tpu.core_type<tc>, window_params = [{transform_indices = @transform_0, window_bounds = array<i64: 8, 128>}, {transform_indices = @transform_1, window_bounds = array<i64: 8, 128>}]} {
    %c8_i32 = arith.constant 8 : i32
    %0 = arith.muli %arg0, %c8_i32 : i32
    %1 = tpu.iota {dimensions = array<i32: 1>} : vector<1x128xi32>
    %c1_i32 = arith.constant 1 : i32
    %2 = vector.broadcast %c1_i32 : i32 to vector<1x128xi32>
    %3 = arith.andi %1, %2 : vector<1x128xi32>
    %4 = arith.sitofp %3 : vector<1x128xi32> to vector<1x128xf32>
    %c1_i32_0 = arith.constant 1 : i32
    %5 = vector.broadcast %c1_i32_0 : i32 to vector<1x128xi32>
    %6 = arith.andi %1, %5 : vector<1x128xi32>
    %7 = arith.subi %1, %6 : vector<1x128xi32>
    %8 = arith.sitofp %7 : vector<1x128xi32> to vector<1x128xf32>
    %cst = arith.constant -0.0719557852 : f32
    %9 = vector.broadcast %cst : f32 to vector<1x128xf32>
    %10 = arith.mulf %8, %9 : vector<1x128xf32>
    %11 = math.exp %10 : vector<1x128xf32>
    %cst_1 = arith.constant 1.57079637 : f32
    %12 = vector.broadcast %cst_1 : f32 to vector<1x128xf32>
    %13 = arith.mulf %4, %12 : vector<1x128xf32>
    %14 = tpu.iota {dimensions = array<i32: 0>} : vector<8x128xi32>
    %15 = vector.broadcast %0 : i32 to vector<8x128xi32>
    %16 = arith.addi %14, %15 : vector<8x128xi32>
    %17 = arith.sitofp %16 : vector<8x128xi32> to vector<8x128xf32>
    %18 = vector.broadcast %11 : vector<1x128xf32> to vector<8x128xf32>
    %19 = arith.mulf %17, %18 : vector<8x128xf32>
    %20 = vector.broadcast %13 : vector<1x128xf32> to vector<8x128xf32>
    %21 = arith.addf %19, %20 : vector<8x128xf32>
    %22 = math.sin %21 : vector<8x128xf32>
    %c0 = arith.constant 0 : index
    %c0_2 = arith.constant 0 : index
    %23 = vector.load %arg1[%c0, %c0_2] : memref<8x128xf32, #tpu.memory_space<vmem>>, vector<8x128xf32>
    %24 = arith.addf %23, %22 : vector<8x128xf32>
    %c0_3 = arith.constant 0 : index
    %c0_4 = arith.constant 0 : index
    %25 = vector.load %arg2[%c0_3, %c0_4] : memref<8x128xf32, #tpu.memory_space<vmem>>, vector<8x128xf32>
    tpu.vector_store %arg2[%c0_3, %c0_4], %24 {strides = array<i32>} : memref<8x128xf32, #tpu.memory_space<vmem>>, vector<8x128xf32>,
    return
  }
  func.func @transform_0(%arg0: i32) -> (i32, i32) {
    %c0_i32 = arith.constant 0 : i32
    %c0_i32_0 = arith.constant 0 : i32
    return %arg0, %c0_i32 : i32, i32
  }
  func.func @transform_1(%arg0: i32) -> (i32, i32) {
    %c0_i32 = arith.constant 0 : i32
    %c0_i32_0 = arith.constant 0 : i32
    return %arg0, %c0_i32 : i32, i32
  }
}

module attributes {stable_mosaic.version = 11 : i64} {
  func.func @_pe_table_add_kernel(%arg0: i32, %arg1: memref<8x32xf32, #tpu.memory_space<vmem>>, %arg2: memref<8x32xf32, #tpu.memory_space<vmem>>, %arg3: memref<8x32xf32, #tpu.memory_space<vmem>>) attributes {dimension_semantics = [#tpu.dimension_semantics<parallel>], iteration_bounds = array<i64: 1>, scalar_prefetch = 0 : i64, scratch_operands = 0 : i64, tpu.core_type = #tpu.core_type<tc>, window_params = [{transform_indices = @transform_0, window_bounds = array<i64: 8, 32>}, {transform_indices = @transform_1, window_bounds = array<i64: 8, 32>}, {transform_indices = @transform_2, window_bounds = array<i64: 8, 32>}]} {
    %c0 = arith.constant 0 : index
    %c0_0 = arith.constant 0 : index
    %0 = vector.load %arg1[%c0, %c0_0] : memref<8x32xf32, #tpu.memory_space<vmem>>, vector<8x32xf32>
    %c0_1 = arith.constant 0 : index
    %c0_2 = arith.constant 0 : index
    %1 = vector.load %arg2[%c0_1, %c0_2] : memref<8x32xf32, #tpu.memory_space<vmem>>, vector<8x32xf32>
    %2 = arith.addf %0, %1 : vector<8x32xf32>
    %c0_3 = arith.constant 0 : index
    %c0_4 = arith.constant 0 : index
    %3 = vector.load %arg3[%c0_3, %c0_4] : memref<8x32xf32, #tpu.memory_space<vmem>>, vector<8x32xf32>
    tpu.vector_store %arg3[%c0_3, %c0_4], %2 {strides = array<i32>} : memref<8x32xf32, #tpu.memory_space<vmem>>, vector<8x32xf32>,
    return
  }
  func.func @transform_0(%arg0: i32) -> (i32, i32) {
    %c0_i32 = arith.constant 0 : i32
    %c0_i32_0 = arith.constant 0 : i32
    return %arg0, %c0_i32 : i32, i32
  }
  func.func @transform_1(%arg0: i32) -> (i32, i32) {
    %c0_i32 = arith.constant 0 : i32
    %c0_i32_0 = arith.constant 0 : i32
    return %arg0, %c0_i32 : i32, i32
  }
  func.func @transform_2(%arg0: i32) -> (i32, i32) {
    %c0_i32 = arith.constant 0 : i32
    %c0_i32_0 = arith.constant 0 : i32
    return %arg0, %c0_i32 : i32, i32
  }
}

</mosaic_0001>

<llo_original>
// kernel: tpu_custom_call.1
$region0: #{tpu_custom_call.1}
  #allocation0 [shape = 'u32[]', space=smem, size = 0x4, offset = 0x4, fixed_abs, tag = 'smem constant byte address 0x4 - core index']
  #allocation1 [shape = 'u32[72,128]{1,0:T(1,128)}', space=vmem, size = 0x9000, scoped, tag = 'internal scratch']
  %s0 = inlined_call_operand.hbm [shape: f32[8,128], index: 0, kind: input, shape index: {}]
  %s1 = inlined_call_operand.hbm [shape: f32[8,128], index: 1, kind: output, shape index: {}]
  %s2 = sld [smem:[#allocation0]]
  $region18: #{tpu_custom_call.1} parent=0
    _
  %s4 = ssub.s32 1, %s2
  %s5 = scalar_select 0, %s4, %s2
  $region1: #{tpu_custom_call.1} parent=0
    #allocation2 [shape = 'u8[4096]{0}', space=vmem, size = 0x1000, scoped, tag = 'input window, operand 0, single buffered']
    #allocation3 [shape = 's32[1]{0}', space=sflag, size = 0x4, scoped, tag = 'scoped memory for tpu_custom_call.1']
    #allocation4 [shape = 's32[1]{0}', space=sflag, size = 0x4, scoped, tag = 'scoped memory for tpu_custom_call.1']
    #allocation5 [shape = 'u8[4096]{0}', space=vmem, size = 0x1000, scoped, tag = 'output window, operand 0, single buffered']
    %6 = vsyncpa [#allocation3], 0
    %7 = vsyncpa [#allocation4], 0
    // Predicated region
    $region2: #{tpu_custom_call.1} parent=1 // pred_check
      _
    $region3: #{tpu_custom_call.1} parent=1 // pred_check_branch
      %9 = sbr.rel (0) target = $region5
    $region4: #{tpu_custom_call.1} parent=1 // pred_region
      %11 = vsyncadd [#allocation3], 0
      %s13 = sshll.u32 %s0, 4
      %s14 = int_to_ptr.hbm [resolvable:$true] %s13
      %s15 = sshll.u32 [#allocation2], 4
      %s16 = int_to_ptr.vmem [resolvable:$true] %s15
      %18 = dma.hbm_to_vmem [thread:$0]  %s14, 128, %s16, [#allocation3]
    $region5: #{tpu_custom_call.1} parent=1 // pred_fallthru
      _
    // Predicated region
    $region6: #{tpu_custom_call.1} parent=1 // pred_check
      _
    $region7: #{tpu_custom_call.1} parent=1 // pred_check_branch
      %20 = sbr.rel (0) target = $region9
    $region8: #{tpu_custom_call.1} parent=1 // pred_region
      %22 = dma.done [#allocation3], 128
    $region9: #{tpu_custom_call.1} parent=1 // pred_fallthru
      _
    %s23 = smul.u32 0, 8
    %v24 = vlaneseq
    %v25 = vand.u32 %v24, 127
    %v26 = vand.u32 %v25, 1
    %v27 = vcvt.s32.f32 %v26
    %v28 = vsub.s32 %v25, %v26
    %v29 = vcvt.s32.f32 %v28
    %v30 = vmul.f32 %v29, -0.071955785
    %v31 = vmul.f32 %v30, 1.442695
    %v32 = vpow.pop %v31
    %v33 = vmul.f32 %v27, 1.5707964
    %v34 = vlaneseq
    %v35 = vshrl.u32 %v34, 7
    %v36 = vstv %s23
    %v37 = vadd.s32 %v35, %v36
    %v38 = vcvt.s32.f32 %v37
    %v39 = vmul.f32 %v38, %v32
    %v40 = vadd.f32 %v39, %v33
    %v41 = vand.u32 2147483647, %v40
    %vm42 = vcmp.le.f32.partialorder %v41, 0.7853982
    %vm43 = vcmp.lt.s32.totalorder %v40, 0
    %v44 = vand.u32 %v40, 2139095040
    %v45 = vshrl.u32 %v44, 23
    %v46 = vsub.s32 %v45, 127
    %v47 = vand.u32 2147483647, %v40
    %v48 = vand.u32 %v47, 8388607
    %v49 = vor.u32 %v48, 8388608
    %v50 = vsub.s32 0, %v49
    %v51 = vadd.s32 %v46, 1
    %vm52 = vcmp.gt.s32.totalorder %v51, 0
    %v53 = vsel %vm52, %v51, 0
    %v54 = vshrl.u32 %v53, 5
    %v55 = vand.u32 %v53, 31
    %v56 = vsub.s32 32, %v55
    %v57 = vshrl.u32 683565275, %v56
    %v58 = vshll.u32 683565275, %v55
    %v59 = vshrl.u32 2475754826, %v56
    %v60 = vor.u32 %v58, %v59
    %v61 = vshll.u32 2475754826, %v55
    %v62 = vshrl.u32 2131351028, %v56
    %v63 = vor.u32 %v61, %v62
    %v64 = vshll.u32 2131351028, %v55
    %v65 = vshrl.u32 2102212464, %v56
    %v66 = vor.u32 %v64, %v65
    %v67 = vshll.u32 2102212464, %v55
    %v68 = vshrl.u32 920167782, %v56
    %v69 = vor.u32 %v67, %v68
    %v70 = vshll.u32 920167782, %v55
    %v71 = vshrl.u32 1326507024, %v56
    %v72 = vor.u32 %v70, %v71
    %vm73 = vcmp.lt.s32.totalorder %v54, 1
    %vm74 = vcmp.lt.s32.totalorder %v54, 2
    %vm75 = vcmp.lt.s32.totalorder %v54, 3
    %vm76 = vcmp.lt.s32.totalorder %v54, 4
    %v77 = vsel %vm73, %v57, %v60
    %v78 = vsel %vm76, %v66, 2102212464
    %v79 = vsel %vm75, %v63, %v78
    %v80 = vsel %vm74, %v77, %v79
    %v81 = vsel %vm73, %v60, %v63
    %v82 = vsel %vm76, %v69, 920167782
    %v83 = vsel %vm75, %v66, %v82
    %v84 = vsel %vm74, %v81, %v83
    %v85 = vsel %vm73, %v63, %v66
    %v86 = vsel %vm76, %v72, 1326507024
    %v87 = vsel %vm75, %v69, %v86
    %v88 = vsel %vm74, %v85, %v87
    %v89 = vshll.u32 %v49, 8
    %v90 = vand.u32 %v89, 65535
    %v91 = vshrl.u32 %v89, 16
    %v92 = vand.u32 %v88, 65535
    %v93 = vshrl.u32 %v88, 16
    %v94 = vmul.u32 %v90, %v92
    %v95 = vmul.u32 %v90, %v93
    %v96 = vmul.u32 %v91, %v92
    %v97 = vmul.u32 %v91, %v93
    %v98 = vshll.u32 %v95, 16
    %v99 = vshrl.u32 %v95, 16
    %v100 = vshll.u32 %v96, 16
    %v101 = vshrl.u32 %v96, 16
    %vm102 = vc.u32 %v94, %v98
    %v103 = vsel %vm102, 1, 0
    %v104 = vadd.s32 %v94, %v98
    %v105 = vadd.s32 %v97, %v103
    %vm106 = vc.u32 %v104, %v100
    %v107 = vsel %vm106, 1, 0
    %v108 = vadd.s32 %v104, %v100
    %v109 = vadd.s32 %v105, %v107
    %v110 = vadd.s32 %v109, %v99
    %v111 = vadd.s32 %v110, %v101
    %v112 = vand.u32 %v89, 65535
    %v113 = vshrl.u32 %v89, 16
    %v114 = vand.u32 %v84, 65535
    %v115 = vshrl.u32 %v84, 16
    %v116 = vmul.u32 %v112, %v114
    %v117 = vmul.u32 %v112, %v115
    %v118 = vmul.u32 %v113, %v114
    %v119 = vmul.u32 %v113, %v115
    %v120 = vshll.u32 %v117, 16
    %v121 = vshrl.u32 %v117, 16
    %v122 = vshll.u32 %v118, 16
    %v123 = vshrl.u32 %v118, 16
    %vm124 = vc.u32 %v116, %v120
    %v125 = vsel %vm124, 1, 0
    %v126 = vadd.s32 %v116, %v120
    %v127 = vadd.s32 %v119, %v125
    %vm128 = vc.u32 %v126, %v122
    %v129 = vsel %vm128, 1, 0
    %v130 = vadd.s32 %v126, %v122
    %v131 = vadd.s32 %v127, %v129
    %v132 = vadd.s32 %v131, %v121
    %v133 = vadd.s32 %v132, %v123
    %v134 = vmul.u32 %v89, %v80
    %v135 = vadd.s32 %v111, %v130
    %vm136 = vc.u32 %v111, %v130
    %v137 = vadd.s32 %v133, 1
    %v138 = vsel %vm136, %v137, %v133
    %v139 = vadd.s32 %v134, %v138
    %v140 = vadd.s32 %v139, 536870912
    %v141 = vshrl.u32 %v140, 30
    %v142 = vshll.u32 %v141, 30
    %v143 = vsub.s32 %v139, %v142
    %vm144 = vcmp.lt.s32.totalorder %v143, 0
    %v145 = vsub.s32 0, %v143
    %v146 = vsel %vm144, %v145, %v143
    %v147 = vclz %v146
    %v148 = vsub.s32 %v147, 2
    %vm149 = vcmp.gt.s32.totalorder 0, %v148
    %v150 = vsel %vm149, 0, %v148
    %v151 = vsub.s32 32, %v150
    %v152 = vshll.u32 %v143, %v150
    %v153 = vshrl.u32 %v135, %v151
    %v154 = vor.u32 %v152, %v153
    %v155 = vsub.s32 4294967266, %v150
    %v156 = vadd.s32 %v155, 127
    %v157 = vshll.u32 %v156, 23
    %v158 = vor.u32 4788187, %v157
    %v159 = vand.u32 2147483647, %v158
    %v161 = vcvt.s32.f32 %v154
    %v162 = vmul.f32 %v161, %v159
    %v163 = vxor.u32 %v162, 2147483648
    %v164 = vsel %vm43, %v163, %v162
    %v165 = vsub.s32 4, %v141
    %v166 = vsel %vm43, %v165, %v141
    %v167 = vsel %vm42, %v40, %v164
    %v168 = vsel %vm42, 0, %v166
    %v169 = vmul.f32 %v167, %v167
    %v170 = vmul.f32 %v169, -0.001358992
    %v171 = vadd.f32 %v170, 0.041655596
    %v172 = vmul.f32 %v169, %v171
    %v173 = vadd.f32 %v172, -0.4999988
    %v174 = vmul.f32 %v169, %v173
    %v175 = vadd.f32 1.0, %v174
    %v176 = vmul.f32 %v167, %v167
    %v177 = vmul.f32 %v176, -0.00019511016
    %v178 = vadd.f32 %v177, 0.008332121
    %v179 = vmul.f32 %v176, %v178
    %v180 = vadd.f32 %v179, -0.16666654
    %v181 = vmul.f32 %v176, %v180
    %v182 = vadd.f32 %v181, 1.0
    %v183 = vmul.f32 %v182, %v167
    %vm184 = vweird.f32 %v40
    %v185 = vadd.s32 %v168, 3
    %v186 = vand.u32 %v185, 3
    %vm187 = vcmp.lt.s32.totalorder %v186, 2
    %vm188 = vcmp.eq.s32.totalorder %v186, 0
    %v189 = vxor.u32 %v183, 2147483648
    %v190 = vsel %vm188, %v175, %v189
    %vm191 = vcmp.eq.s32.totalorder %v186, 2
    %v192 = vxor.u32 %v175, 2147483648
    %v193 = vsel %vm191, %v192, %v183
    %v194 = vsel %vm187, %v190, %v193
    %v195 = vsel %vm184, nan, %v194
    %v196 = vld [vmem:[#allocation2] sm:$0xff]
    %v197 = vadd.f32 %v196, %v195
    %198 = vst [vmem:[#allocation5] sm:$0xff] %v197
    // Predicated region
    $region10: #{tpu_custom_call.1} parent=1 // pred_check
      _
    $region11: #{tpu_custom_call.1} parent=1 // pred_check_branch
      %200 = sbr.rel (0) target = $region13
    $region12: #{tpu_custom_call.1} parent=1 // pred_region
      %202 = vsyncadd [#allocation4], 0
      %s204 = sshll.u32 [#allocation5], 4
      %s205 = int_to_ptr.vmem [resolvable:$true] %s204
      %s206 = sshll.u32 %s1, 4
      %s207 = int_to_ptr.hbm [resolvable:$true] %s206
      %209 = dma.vmem_to_hbm [thread:$0]  %s205, 128, %s207, [#allocation4]
    $region13: #{tpu_custom_call.1} parent=1 // pred_fallthru
      _
    // Predicated region
    $region14: #{tpu_custom_call.1} parent=1 // pred_check
      _
    $region15: #{tpu_custom_call.1} parent=1 // pred_check_branch
      %211 = sbr.rel (0) target = $region17
    $region16: #{tpu_custom_call.1} parent=1 // pred_region
      %213 = dma.done [#allocation4], 128
    $region17: #{tpu_custom_call.1} parent=1 // pred_fallthru
      _
    %214 = vsyncpa [#allocation3], 1
    %215 = vsyncpa [#allocation4], 1

// kernel: tpu_custom_call.1
$region0: #{tpu_custom_call.1}
  #allocation0 [shape = 'u32[]', space=smem, size = 0x4, offset = 0x4, fixed_abs, tag = 'smem constant byte address 0x4 - core index']
  #allocation1 [shape = 'u32[72,128]{1,0:T(1,128)}', space=vmem, size = 0x9000, scoped, tag = 'internal scratch']
  %s0 = inlined_call_operand.vmem [shape: f32[8,32], index: 0, kind: input, shape index: {}]
  %s1 = inlined_call_operand.vmem [shape: f32[5000,32], index: 1, kind: input, shape index: {}]
  %s2 = inlined_call_operand.hbm [shape: f32[8,32], index: 2, kind: output, shape index: {}]
  %s3 = sld [smem:[#allocation0]]
  $region18: #{tpu_custom_call.1} parent=0
    _
  %s5 = ssub.s32 1, %s3
  %s6 = scalar_select 0, %s5, %s3
  $region1: #{tpu_custom_call.1} parent=0
    #allocation2 [shape = 'u8[4096]{0}', space=vmem, size = 0x1000, scoped, tag = 'output window, operand 0, single buffered']
    #allocation3 [shape = 's32[1]{0}', space=sflag, size = 0x4, scoped, tag = 'scoped memory for tpu_custom_call.1']
    %7 = vsyncpa [#allocation3], 0
    // Predicated region
    $region2: #{tpu_custom_call.1} parent=1 // pred_check
      _
    $region3: #{tpu_custom_call.1} parent=1 // pred_check_branch
      %9 = sbr.rel (0) target = $region5
    $region4: #{tpu_custom_call.1} parent=1 // pred_region
      _
    $region5: #{tpu_custom_call.1} parent=1 // pred_fallthru
      _
    // Predicated region
    $region6: #{tpu_custom_call.1} parent=1 // pred_check
      _
    $region7: #{tpu_custom_call.1} parent=1 // pred_check_branch
      %11 = sbr.rel (0) target = $region9
    $region8: #{tpu_custom_call.1} parent=1 // pred_region
      _
    $region9: #{tpu_custom_call.1} parent=1 // pred_fallthru
      _
    %v12 = vld [vmem:[%s0] sm:$0xff]
    %v13 = vld [vmem:[%s1] sm:$0xff]
    %v14 = vadd.f32 %v12, %v13
    %vm15 = vcmask 261120
    %16 = vst.msk [vmem:[#allocation2] sm:$0xff] %vm15, %v14
    // Predicated region
    $region10: #{tpu_custom_call.1} parent=1 // pred_check
      _
    $region11: #{tpu_custom_call.1} parent=1 // pred_check_branch
      %18 = sbr.rel (0) target = $region13
    $region12: #{tpu_custom_call.1} parent=1 // pred_region
      %20 = vsyncadd [#allocation3], 0
      %s22 = sshll.u32 [#allocation2], 4
      %s23 = int_to_ptr.vmem [resolvable:$true] %s22
      %s24 = sshll.u32 %s2, 4
      %s25 = int_to_ptr.hbm [resolvable:$true] %s24
      %27 = dma.vmem_to_hbm [thread:$0]  %s23, 128, %s25, [#allocation3]
    $region13: #{tpu_custom_call.1} parent=1 // pred_fallthru
      _
    // Predicated region
    $region14: #{tpu_custom_call.1} parent=1 // pred_check
      _
    $region15: #{tpu_custom_call.1} parent=1 // pred_check_branch
      %29 = sbr.rel (0) target = $region17
    $region16: #{tpu_custom_call.1} parent=1 // pred_region
      %31 = dma.done [#allocation3], 128
    $region17: #{tpu_custom_call.1} parent=1 // pred_fallthru
      _
    %32 = vsyncpa [#allocation3], 1

</llo_original>
